<compile_context>
chip_gen: v5e
topology: v5e:2x2
jax: 0.10.0
libtpu: 0.0.40
codegen_flags: <defaults>
</compile_context>

<pallas_src>
import functools

import jax
import jax.numpy as jnp
from jax.experimental import pallas as pl
from jax.experimental.pallas import tpu as pltpu


def _round_up(x, m):
    return ((x + m - 1) // m) * m


def _cdiv(a, b):
    return (a + b - 1) // b


def _pad_to(a, shape):
    pads = [(0, t - s) for s, t in zip(a.shape, shape)]
    if all(p == (0, 0) for p in pads):
        return a
    return jnp.pad(a, pads)


def _vmem_limit_bytes():
    # ~48 MiB on v7x (64 MiB physical), ~96 MiB on v5e/v6e (128 MiB physical).
    try:
        cap = int(pltpu.get_tpu_info().vmem_capacity_bytes)
    except Exception:  # off-TPU trace / older API: conservative default
        cap = 128 * 1024 * 1024
    return min(100 * 1024 * 1024, (cap * 3) // 4)


def _encoder_noise_kernel(vf_ref, att_ref, w1v_ref, w1a_ref, b1_ref,
                          wh_ref, bh_ref, out_ref):
    # First layer: the concat is fused as two MXU pushes into one f32 acc.
    h = jnp.dot(vf_ref[...], w1v_ref[...], preferred_element_type=jnp.float32)
    h = h + jnp.dot(att_ref[...], w1a_ref[...],
                    preferred_element_type=jnp.float32)
    h = jnp.tanh(h + b1_ref[...])              # f32 bias-add + tanh (EUP)
    h = h.astype(wh_ref.dtype)                 # bf16 operand for the MXU

    # Fused mu||var head: one wide matmul, one tanh, one lane-dense store.
    y = jnp.dot(h, wh_ref[...], preferred_element_type=jnp.float32)
    out_ref[...] = jnp.tanh(y + bh_ref[...]).astype(out_ref.dtype)


def prepare_encoder_noise_params(w1, b1, w_mu, b_mu, w_var, b_var, d_res,
                                 compute_dtype=jnp.bfloat16):
    """One-time weight prep (pad + cast + fuse heads). Call OUTSIDE the step.

    w1: (resSize + attSize, ngh) pre-transposed; b1: (ngh,)
    w_mu, w_var: (ngh, nz) pre-transposed;       b_mu, b_var: (nz,)
    Returns (w1v, w1a, b1p, w_heads, b_heads) ready for encoder_noise_forward.
    """
    d_in, ngh = w1.shape
    d_att = d_in - d_res
    nz = w_mu.shape[1]

    d_res_p = _round_up(d_res, 128)
    d_att_p = _round_up(d_att, 128)
    ngh_p = _round_up(ngh, 128)
    nz_p = _round_up(nz, 128)

    # Split W1 so no activation concat is ever materialized in HBM.
    w1v = _pad_to(w1[:d_res].astype(compute_dtype), (d_res_p, ngh_p))
    w1a = _pad_to(w1[d_res:].astype(compute_dtype), (d_att_p, ngh_p))
    b1p = _pad_to(b1.reshape(1, -1).astype(jnp.float32), (1, ngh_p))

    # Fused heads: [W_mu | W_var] -> (ngh_p, 2*nz_p), zero-padded.
    w_heads = jnp.zeros((ngh_p, 2 * nz_p), compute_dtype)
    w_heads = w_heads.at[:ngh, :nz].set(w_mu.astype(compute_dtype))
    w_heads = w_heads.at[:ngh, nz_p:nz_p + nz].set(w_var.astype(compute_dtype))
    b_heads = jnp.zeros((1, 2 * nz_p), jnp.float32)
    b_heads = b_heads.at[0, :nz].set(b_mu.astype(jnp.float32))
    b_heads = b_heads.at[0, nz_p:nz_p + nz].set(b_var.astype(jnp.float32))

    return w1v, w1a, b1p, w_heads, b_heads


@functools.partial(jax.jit,
                   static_argnames=("nz", "tm", "single_buffer_weights"))
def encoder_noise_forward(visual_feats, attrs, w1v, w1a, b1, w_heads, b_heads,
                          *, nz, tm=None, single_buffer_weights=True):
    """visual_feats: (B, resSize), attrs: (B, attSize); weights from
    prepare_encoder_noise_params. Returns (mu, var), each (B, nz) float32."""
    B, d_res = visual_feats.shape
    d_att = attrs.shape[1]
    d_res_p, ngh_p = w1v.shape
    d_att_p = w1a.shape[0]
    two_nz_p = w_heads.shape[1]
    nz_p = two_nz_p // 2
    compute_dtype = w1v.dtype

    # Batch tile: minimize padding waste, multiple of 8 sublanes.
    if tm is None:
        cap = 512 if ngh_p <= 1024 else 256
        n_steps = max(1, _cdiv(B, cap))
        tm = _round_up(_cdiv(B, n_steps), 8)
    b_p = _round_up(B, tm)
    grid = (b_p // tm,)

    # Only activations are padded/cast per call (cheap); weights come prepped.
    vf = _pad_to(visual_feats.astype(compute_dtype), (b_p, d_res_p))
    at = _pad_to(attrs.astype(compute_dtype), (b_p, d_att_p))

    def row_spec(shp):       # streamed per batch tile (double-buffered)
        return pl.BlockSpec(shp, lambda i: (i, 0))

    def resident_spec(shp):  # constant-index weights: single-buffered
        if single_buffer_weights:
            return pl.BlockSpec(shp, lambda i: (0, 0),
                                pipeline_mode=pl.Buffered(1))
        return pl.BlockSpec(shp, lambda i: (0, 0))

    flops = 2 * b_p * ngh_p * (d_res_p + d_att_p) + 2 * b_p * ngh_p * two_nz_p
    transcendentals = b_p * (ngh_p + two_nz_p)
    bytes_accessed = sum(int(x.size) * x.dtype.itemsize
                         for x in (vf, at, w1v, w1a, b1, w_heads, b_heads))
    bytes_accessed += b_p * two_nz_p * 4  # f32 output

    out = pl.pallas_call(
        _encoder_noise_kernel,
        out_shape=jax.ShapeDtypeStruct((b_p, two_nz_p), jnp.float32),
        grid=grid,
        in_specs=[
            row_spec((tm, d_res_p)),
            row_spec((tm, d_att_p)),
            resident_spec((d_res_p, ngh_p)),
            resident_spec((d_att_p, ngh_p)),
            resident_spec((1, ngh_p)),
            resident_spec((ngh_p, two_nz_p)),
            resident_spec((1, two_nz_p)),
        ],
        out_specs=row_spec((tm, two_nz_p)),
        compiler_params=pltpu.CompilerParams(
            dimension_semantics=("parallel",),       # megacore / v7x 2-TC
            vmem_limit_bytes=_vmem_limit_bytes(),
        ),
        cost_estimate=pl.CostEstimate(
            flops=int(flops),
            transcendentals=int(transcendentals),
            bytes_accessed=int(bytes_accessed),
        ),
    )(vf, at, w1v, w1a, b1, w_heads, b_heads)

    mu = out[:B, :nz]
    var = out[:B, nz_p:nz_p + nz]
    return mu, var


def init_params(key, res_size, att_size, ngh, nz):
    """Mimic weights_init: Linear weights ~ N(0, 0.02), biases = 0.
    Stored pre-transposed as (in, out)."""
    d_in = res_size + att_size
    k1, k2, k3 = jax.random.split(key, 3)
    w1 = 0.02 * jax.random.normal(k1, (d_in, ngh), dtype=jnp.float32)
    b1 = jnp.zeros((ngh,), dtype=jnp.float32)
    w_mu = 0.02 * jax.random.normal(k2, (ngh, nz), dtype=jnp.float32)
    b_mu = jnp.zeros((nz,), dtype=jnp.float32)
    w_var = 0.02 * jax.random.normal(k3, (ngh, nz), dtype=jnp.float32)
    b_var = jnp.zeros((nz,), dtype=jnp.float32)
    return w1, b1, w_mu, b_mu, w_var, b_var


if __name__ == "__main__":
    # small opt-like config (deliberately non-128-aligned to exercise padding)
    res_size, att_size, ngh, nz = 64, 32, 48, 20
    batch = 2

    key = jax.random.PRNGKey(0)
    k_vis, k_att, k_par, k_b = jax.random.split(key, 4)

    visual_feats = jax.random.normal(k_vis, (batch, res_size), dtype=jnp.float32)
    attrs = jax.random.normal(k_att, (batch, att_size), dtype=jnp.float32)

    w1, b1, w_mu, b_mu, w_var, b_var = init_params(
        k_par, res_size, att_size, ngh, nz
    )
    # nonzero biases purely to exercise the bias-add path in the test
    kb1, kb2, kb3 = jax.random.split(k_b, 3)
    b1 = 0.1 * jax.random.normal(kb1, (ngh,), dtype=jnp.float32)
    b_mu = 0.1 * jax.random.normal(kb2, (nz,), dtype=jnp.float32)
    b_var = 0.1 * jax.random.normal(kb3, (nz,), dtype=jnp.float32)

    # One-time weight prep (hoisted out of the per-call forward).
    params_bf16 = prepare_encoder_noise_params(
        w1, b1, w_mu, b_mu, w_var, b_var, res_size, compute_dtype=jnp.bfloat16)
    params_f32 = prepare_encoder_noise_params(
        w1, b1, w_mu, b_mu, w_var, b_var, res_size, compute_dtype=jnp.float32)

    def run(params, sbw):
        mu, var = encoder_noise_forward(
            visual_feats, attrs, *params, nz=nz, single_buffer_weights=sbw)
        jax.block_until_ready((mu, var))
        return mu, var

    # Prefer single-buffered resident weights; fall back if this JAX build
    # rejects pipeline_mode=pl.Buffered(1) for pallas_call inputs.
    try:
        mu_bf, var_bf = run(params_bf16, True)
        sbw_ok = True
    except Exception:
        mu_bf, var_bf = run(params_bf16, False)
        sbw_ok = False
    mu_f32, var_f32 = run(params_f32, sbw_ok)

    # reference check (pure JAX, mirrors the PyTorch forward)
    x = jnp.concatenate((visual_feats, attrs), axis=1)
    h_ref = jnp.tanh(x @ w1 + b1)
    mu_ref = jnp.tanh(h_ref @ w_mu + b_mu)
    var_ref = jnp.tanh(h_ref @ w_var + b_var)

    assert mu_f32.shape == (batch, nz) and var_f32.shape == (batch, nz)
    assert jnp.allclose(mu_f32, mu_ref, atol=2e-5, rtol=2e-5)
    assert jnp.allclose(var_f32, var_ref, atol=2e-5, rtol=2e-5)
    # bf16 MXU-operand path (default): looser tolerance, f32 accumulation.
    assert jnp.allclose(mu_bf, mu_ref, atol=2e-2, rtol=2e-2)
    assert jnp.allclose(var_bf, var_ref, atol=2e-2, rtol=2e-2)

    print("KERNEL_OK")
</pallas_src>

<mosaic_0001>
module attributes {stable_mosaic.version = 11 : i64} {
  func.func @_encoder_noise_kernel(%arg0: i32, %arg1: memref<8x128xbf16, #tpu.memory_space<vmem>>, %arg2: memref<8x128xbf16, #tpu.memory_space<vmem>>, %arg3: memref<128x128xbf16, #tpu.memory_space<vmem>>, %arg4: memref<128x128xbf16, #tpu.memory_space<vmem>>, %arg5: memref<1x128xf32, #tpu.memory_space<vmem>>, %arg6: memref<128x256xbf16, #tpu.memory_space<vmem>>, %arg7: memref<1x256xf32, #tpu.memory_space<vmem>>, %arg8: memref<8x256xf32, #tpu.memory_space<vmem>>) attributes {dimension_semantics = [#tpu.dimension_semantics<parallel>], iteration_bounds = array<i64: 1>, scalar_prefetch = 0 : i64, scratch_operands = 0 : i64, tpu.core_type = #tpu.core_type<tc>, window_params = [{transform_indices = @transform_0, window_bounds = array<i64: 8, 128>}, {transform_indices = @transform_1, window_bounds = array<i64: 8, 128>}, {pipeline_mode = #tpu.pipeline_mode<synchronous>, transform_indices = @transform_2, window_bounds = array<i64: 128, 128>}, {pipeline_mode = #tpu.pipeline_mode<synchronous>, transform_indices = @transform_3, window_bounds = array<i64: 128, 128>}, {pipeline_mode = #tpu.pipeline_mode<synchronous>, transform_indices = @transform_4, window_bounds = array<i64: 1, 128>}, {pipeline_mode = #tpu.pipeline_mode<synchronous>, transform_indices = @transform_5, window_bounds = array<i64: 128, 256>}, {pipeline_mode = #tpu.pipeline_mode<synchronous>, transform_indices = @transform_6, window_bounds = array<i64: 1, 256>}, {transform_indices = @transform_7, window_bounds = array<i64: 8, 256>}]} {
    %c0 = arith.constant 0 : index
    %c0_0 = arith.constant 0 : index
    %0 = vector.load %arg1[%c0, %c0_0] : memref<8x128xbf16, #tpu.memory_space<vmem>>, vector<8x128xbf16>
    %c0_1 = arith.constant 0 : index
    %c0_2 = arith.constant 0 : index
    %1 = vector.load %arg3[%c0_1, %c0_2] : memref<128x128xbf16, #tpu.memory_space<vmem>>, vector<128x128xbf16>
    %cst = arith.constant dense<0.000000e+00> : vector<8x128xf32>
    %2 = tpu.matmul %0, %1, %cst {dimension_numbers = #tpu.dot_dimension_numbers<[1], [0], [0], [1], [0, 0, 1, 1], [], []>} : vector<8x128xbf16>, vector<128x128xbf16>, vector<8x128xf32> -> vector<8x128xf32>
    %c0_3 = arith.constant 0 : index
    %c0_4 = arith.constant 0 : index
    %3 = vector.load %arg2[%c0_3, %c0_4] : memref<8x128xbf16, #tpu.memory_space<vmem>>, vector<8x128xbf16>
    %c0_5 = arith.constant 0 : index
    %c0_6 = arith.constant 0 : index
    %4 = vector.load %arg4[%c0_5, %c0_6] : memref<128x128xbf16, #tpu.memory_space<vmem>>, vector<128x128xbf16>
    %cst_7 = arith.constant dense<0.000000e+00> : vector<8x128xf32>
    %5 = tpu.matmul %3, %4, %cst_7 {dimension_numbers = #tpu.dot_dimension_numbers<[1], [0], [0], [1], [0, 0, 1, 1], [], []>} : vector<8x128xbf16>, vector<128x128xbf16>, vector<8x128xf32> -> vector<8x128xf32>
    %6 = arith.addf %2, %5 : vector<8x128xf32>
    %c0_8 = arith.constant 0 : index
    %c0_9 = arith.constant 0 : index
    %7 = vector.load %arg5[%c0_8, %c0_9] : memref<1x128xf32, #tpu.memory_space<vmem>>, vector<1x128xf32>
    %8 = vector.broadcast %7 : vector<1x128xf32> to vector<8x128xf32>
    %9 = arith.addf %6, %8 : vector<8x128xf32>
    %10 = math.tanh %9 : vector<8x128xf32>
    %11 = arith.truncf %10 : vector<8x128xf32> to vector<8x128xbf16>
    %c0_10 = arith.constant 0 : index
    %c0_11 = arith.constant 0 : index
    %12 = vector.load %arg6[%c0_10, %c0_11] : memref<128x256xbf16, #tpu.memory_space<vmem>>, vector<128x256xbf16>
    %cst_12 = arith.constant dense<0.000000e+00> : vector<8x256xf32>
    %13 = tpu.matmul %11, %12, %cst_12 {dimension_numbers = #tpu.dot_dimension_numbers<[1], [0], [0], [1], [0, 0, 1, 1], [], []>} : vector<8x128xbf16>, vector<128x256xbf16>, vector<8x256xf32> -> vector<8x256xf32>
    %c0_13 = arith.constant 0 : index
    %c0_14 = arith.constant 0 : index
    %14 = vector.load %arg7[%c0_13, %c0_14] : memref<1x256xf32, #tpu.memory_space<vmem>>, vector<1x256xf32>
    %15 = vector.broadcast %14 : vector<1x256xf32> to vector<8x256xf32>
    %16 = arith.addf %13, %15 : vector<8x256xf32>
    %17 = math.tanh %16 : vector<8x256xf32>
    %c0_15 = arith.constant 0 : index
    %c0_16 = arith.constant 0 : index
    %18 = vector.load %arg8[%c0_15, %c0_16] : memref<8x256xf32, #tpu.memory_space<vmem>>, vector<8x256xf32>
    tpu.vector_store %arg8[%c0_15, %c0_16], %17 {strides = array<i32>} : memref<8x256xf32, #tpu.memory_space<vmem>>, vector<8x256xf32>,
    return
  }
  func.func @transform_0(%arg0: i32) -> (i32, i32) {
    %c0_i32 = arith.constant 0 : i32
    %c0_i32_0 = arith.constant 0 : i32
    return %arg0, %c0_i32 : i32, i32
  }
  func.func @transform_1(%arg0: i32) -> (i32, i32) {
    %c0_i32 = arith.constant 0 : i32
    %c0_i32_0 = arith.constant 0 : i32
    return %arg0, %c0_i32 : i32, i32
  }
  func.func @transform_2(%arg0: i32) -> (i32, i32) {
    %c0_i32 = arith.constant 0 : i32
    %c0_i32_0 = arith.constant 0 : i32
    %c0_i32_1 = arith.constant 0 : i32
    return %c0_i32, %c0_i32_0 : i32, i32
  }
  func.func @transform_3(%arg0: i32) -> (i32, i32) {
    %c0_i32 = arith.constant 0 : i32
    %c0_i32_0 = arith.constant 0 : i32
    %c0_i32_1 = arith.constant 0 : i32
    return %c0_i32, %c0_i32_0 : i32, i32
  }
  func.func @transform_4(%arg0: i32) -> (i32, i32) {
    %c0_i32 = arith.constant 0 : i32
    %c0_i32_0 = arith.constant 0 : i32
    %c0_i32_1 = arith.constant 0 : i32
    return %c0_i32, %c0_i32_0 : i32, i32
  }
  func.func @transform_5(%arg0: i32) -> (i32, i32) {
    %c0_i32 = arith.constant 0 : i32
    %c0_i32_0 = arith.constant 0 : i32
    %c0_i32_1 = arith.constant 0 : i32
    return %c0_i32, %c0_i32_0 : i32, i32
  }
  func.func @transform_6(%arg0: i32) -> (i32, i32) {
    %c0_i32 = arith.constant 0 : i32
    %c0_i32_0 = arith.constant 0 : i32
    %c0_i32_1 = arith.constant 0 : i32
    return %c0_i32, %c0_i32_0 : i32, i32
  }
  func.func @transform_7(%arg0: i32) -> (i32, i32) {
    %c0_i32 = arith.constant 0 : i32
    %c0_i32_0 = arith.constant 0 : i32
    return %arg0, %c0_i32 : i32, i32
  }
}

module attributes {stable_mosaic.version = 11 : i64} {
  func.func @_encoder_noise_kernel(%arg0: i32, %arg1: memref<8x128xbf16, #tpu.memory_space<vmem>>, %arg2: memref<8x128xbf16, #tpu.memory_space<vmem>>, %arg3: memref<128x128xbf16, #tpu.memory_space<vmem>>, %arg4: memref<128x128xbf16, #tpu.memory_space<vmem>>, %arg5: memref<1x128xf32, #tpu.memory_space<vmem>>, %arg6: memref<128x256xbf16, #tpu.memory_space<vmem>>, %arg7: memref<1x256xf32, #tpu.memory_space<vmem>>, %arg8: memref<8x256xf32, #tpu.memory_space<vmem>>) attributes {dimension_semantics = [#tpu.dimension_semantics<parallel>], iteration_bounds = array<i64: 1>, scalar_prefetch = 0 : i64, scratch_operands = 0 : i64, tpu.core_type = #tpu.core_type<tc>, window_params = [{transform_indices = @transform_0, window_bounds = array<i64: 8, 128>}, {transform_indices = @transform_1, window_bounds = array<i64: 8, 128>}, {pipeline_mode = #tpu.pipeline_mode<synchronous>, transform_indices = @transform_2, window_bounds = array<i64: 128, 128>}, {pipeline_mode = #tpu.pipeline_mode<synchronous>, transform_indices = @transform_3, window_bounds = array<i64: 128, 128>}, {pipeline_mode = #tpu.pipeline_mode<synchronous>, transform_indices = @transform_4, window_bounds = array<i64: 1, 128>}, {pipeline_mode = #tpu.pipeline_mode<synchronous>, transform_indices = @transform_5, window_bounds = array<i64: 128, 256>}, {pipeline_mode = #tpu.pipeline_mode<synchronous>, transform_indices = @transform_6, window_bounds = array<i64: 1, 256>}, {transform_indices = @transform_7, window_bounds = array<i64: 8, 256>}]} {
    %c0 = arith.constant 0 : index
    %c0_0 = arith.constant 0 : index
    %0 = vector.load %arg1[%c0, %c0_0] : memref<8x128xbf16, #tpu.memory_space<vmem>>, vector<8x128xbf16>
    %c0_1 = arith.constant 0 : index
    %c0_2 = arith.constant 0 : index
    %1 = vector.load %arg3[%c0_1, %c0_2] : memref<128x128xbf16, #tpu.memory_space<vmem>>, vector<128x128xbf16>
    %cst = arith.constant dense<0.000000e+00> : vector<8x128xf32>
    %2 = tpu.matmul %0, %1, %cst {dimension_numbers = #tpu.dot_dimension_numbers<[1], [0], [0], [1], [0, 0, 1, 1], [], []>} : vector<8x128xbf16>, vector<128x128xbf16>, vector<8x128xf32> -> vector<8x128xf32>
    %c0_3 = arith.constant 0 : index
    %c0_4 = arith.constant 0 : index
    %3 = vector.load %arg2[%c0_3, %c0_4] : memref<8x128xbf16, #tpu.memory_space<vmem>>, vector<8x128xbf16>
    %c0_5 = arith.constant 0 : index
    %c0_6 = arith.constant 0 : index
    %4 = vector.load %arg4[%c0_5, %c0_6] : memref<128x128xbf16, #tpu.memory_space<vmem>>, vector<128x128xbf16>
    %cst_7 = arith.constant dense<0.000000e+00> : vector<8x128xf32>
    %5 = tpu.matmul %3, %4, %cst_7 {dimension_numbers = #tpu.dot_dimension_numbers<[1], [0], [0], [1], [0, 0, 1, 1], [], []>} : vector<8x128xbf16>, vector<128x128xbf16>, vector<8x128xf32> -> vector<8x128xf32>
    %6 = arith.addf %2, %5 : vector<8x128xf32>
    %c0_8 = arith.constant 0 : index
    %c0_9 = arith.constant 0 : index
    %7 = vector.load %arg5[%c0_8, %c0_9] : memref<1x128xf32, #tpu.memory_space<vmem>>, vector<1x128xf32>
    %8 = vector.broadcast %7 : vector<1x128xf32> to vector<8x128xf32>
    %9 = arith.addf %6, %8 : vector<8x128xf32>
    %10 = math.tanh %9 : vector<8x128xf32>
    %11 = arith.truncf %10 : vector<8x128xf32> to vector<8x128xbf16>
    %c0_10 = arith.constant 0 : index
    %c0_11 = arith.constant 0 : index
    %12 = vector.load %arg6[%c0_10, %c0_11] : memref<128x256xbf16, #tpu.memory_space<vmem>>, vector<128x256xbf16>
    %cst_12 = arith.constant dense<0.000000e+00> : vector<8x256xf32>
    %13 = tpu.matmul %11, %12, %cst_12 {dimension_numbers = #tpu.dot_dimension_numbers<[1], [0], [0], [1], [0, 0, 1, 1], [], []>} : vector<8x128xbf16>, vector<128x256xbf16>, vector<8x256xf32> -> vector<8x256xf32>
    %c0_13 = arith.constant 0 : index
    %c0_14 = arith.constant 0 : index
    %14 = vector.load %arg7[%c0_13, %c0_14] : memref<1x256xf32, #tpu.memory_space<vmem>>, vector<1x256xf32>
    %15 = vector.broadcast %14 : vector<1x256xf32> to vector<8x256xf32>
    %16 = arith.addf %13, %15 : vector<8x256xf32>
    %17 = math.tanh %16 : vector<8x256xf32>
    %c0_15 = arith.constant 0 : index
    %c0_16 = arith.constant 0 : index
    %18 = vector.load %arg8[%c0_15, %c0_16] : memref<8x256xf32, #tpu.memory_space<vmem>>, vector<8x256xf32>
    tpu.vector_store %arg8[%c0_15, %c0_16], %17 {strides = array<i32>} : memref<8x256xf32, #tpu.memory_space<vmem>>, vector<8x256xf32>,
    return
  }
  func.func @transform_0(%arg0: i32) -> (i32, i32) {
    %c0_i32 = arith.constant 0 : i32
    %c0_i32_0 = arith.constant 0 : i32
    return %arg0, %c0_i32 : i32, i32
  }
  func.func @transform_1(%arg0: i32) -> (i32, i32) {
    %c0_i32 = arith.constant 0 : i32
    %c0_i32_0 = arith.constant 0 : i32
    return %arg0, %c0_i32 : i32, i32
  }
  func.func @transform_2(%arg0: i32) -> (i32, i32) {
    %c0_i32 = arith.constant 0 : i32
    %c0_i32_0 = arith.constant 0 : i32
    %c0_i32_1 = arith.constant 0 : i32
    return %c0_i32, %c0_i32_0 : i32, i32
  }
  func.func @transform_3(%arg0: i32) -> (i32, i32) {
    %c0_i32 = arith.constant 0 : i32
    %c0_i32_0 = arith.constant 0 : i32
    %c0_i32_1 = arith.constant 0 : i32
    return %c0_i32, %c0_i32_0 : i32, i32
  }
  func.func @transform_4(%arg0: i32) -> (i32, i32) {
    %c0_i32 = arith.constant 0 : i32
    %c0_i32_0 = arith.constant 0 : i32
    %c0_i32_1 = arith.constant 0 : i32
    return %c0_i32, %c0_i32_0 : i32, i32
  }
  func.func @transform_5(%arg0: i32) -> (i32, i32) {
    %c0_i32 = arith.constant 0 : i32
    %c0_i32_0 = arith.constant 0 : i32
    %c0_i32_1 = arith.constant 0 : i32
    return %c0_i32, %c0_i32_0 : i32, i32
  }
  func.func @transform_6(%arg0: i32) -> (i32, i32) {
    %c0_i32 = arith.constant 0 : i32
    %c0_i32_0 = arith.constant 0 : i32
    %c0_i32_1 = arith.constant 0 : i32
    return %c0_i32, %c0_i32_0 : i32, i32
  }
  func.func @transform_7(%arg0: i32) -> (i32, i32) {
    %c0_i32 = arith.constant 0 : i32
    %c0_i32_0 = arith.constant 0 : i32
    return %arg0, %c0_i32 : i32, i32
  }
}

</mosaic_0001>

<llo_original>
// kernel: encoder_noise_forward.1
$region0: #{encoder_noise_forward.1}
  #allocation0 [shape = 'u32[]', space=smem, size = 0x4, offset = 0x4, fixed_abs, tag = 'smem constant byte address 0x4 - core index']
  #allocation1 [shape = 'u32[72,128]{1,0:T(1,128)}', space=vmem, size = 0x9000, scoped, tag = 'internal scratch']
  %s0 = inlined_call_operand.vmem [shape: bf16[8,128], index: 0, kind: input, shape index: {}]
  %s1 = inlined_call_operand.vmem [shape: bf16[8,128], index: 1, kind: input, shape index: {}]
  %s2 = inlined_call_operand.hbm [shape: bf16[128,128], index: 2, kind: input, shape index: {}]
  %s3 = inlined_call_operand.hbm [shape: bf16[128,128], index: 3, kind: input, shape index: {}]
  %s4 = inlined_call_operand.vmem [shape: f32[1,128], index: 4, kind: input, shape index: {}]
  %s5 = inlined_call_operand.hbm [shape: bf16[128,256], index: 5, kind: input, shape index: {}]
  %s6 = inlined_call_operand.vmem [shape: f32[1,256], index: 6, kind: input, shape index: {}]
  %s7 = inlined_call_operand.vmem [shape: f32[8,256], index: 7, kind: output, shape index: {}]
  %s8 = sld [smem:[#allocation0]]
  $region50: #{encoder_noise_forward.1} parent=0
    _
  %s10 = ssub.s32 1, %s8
  %s11 = scalar_select 0, %s10, %s8
  $region1: #{encoder_noise_forward.1} parent=0
    #allocation2 [shape = 'u8[32768]{0}', space=vmem, size = 0x8000, scoped, tag = 'input window, operand 2, single buffered']
    #allocation3 [shape = 's32[1]{0}', space=sflag, size = 0x4, scoped, tag = 'scoped memory for encoder_noise_forward.1']
    #allocation4 [shape = 'u8[32768]{0}', space=vmem, size = 0x8000, scoped, tag = 'input window, operand 3, single buffered']
    #allocation5 [shape = 's32[1]{0}', space=sflag, size = 0x4, scoped, tag = 'scoped memory for encoder_noise_forward.1']
    #allocation6 [shape = 'u8[65536]{0}', space=vmem, size = 0x10000, scoped, tag = 'input window, operand 5, single buffered']
    %12 = vsyncpa [#allocation3], 0
    %13 = vsyncpa [#allocation5], 0
    // Predicated region
    $region2: #{encoder_noise_forward.1} parent=1 // pred_check
      _
    $region3: #{encoder_noise_forward.1} parent=1 // pred_check_branch
      %15 = sbr.rel (0) target = $region5
    $region4: #{encoder_noise_forward.1} parent=1 // pred_region
      _
    $region5: #{encoder_noise_forward.1} parent=1 // pred_fallthru
      _
    // Predicated region
    $region6: #{encoder_noise_forward.1} parent=1 // pred_check
      _
    $region7: #{encoder_noise_forward.1} parent=1 // pred_check_branch
      %17 = sbr.rel (0) target = $region9
    $region8: #{encoder_noise_forward.1} parent=1 // pred_region
      _
    $region9: #{encoder_noise_forward.1} parent=1 // pred_fallthru
      _
    // Predicated region
    $region10: #{encoder_noise_forward.1} parent=1 // pred_check
      _
    $region11: #{encoder_noise_forward.1} parent=1 // pred_check_branch
      %19 = sbr.rel (0) target = $region13
    $region12: #{encoder_noise_forward.1} parent=1 // pred_region
      %21 = vsyncadd [#allocation3], 0
      %s22 = sshll.u32 %s2, 4
      %s23 = int_to_ptr.hbm [resolvable:$true] %s22
      %s24 = sshll.u32 [#allocation2], 4
      %s25 = int_to_ptr.vmem [resolvable:$true] %s24
      %30 = dma.hbm_to_vmem [thread:$0]  %s23, 1024, %s25, [#allocation3], 64, 64, 4
    $region13: #{encoder_noise_forward.1} parent=1 // pred_fallthru
      _
    // Predicated region
    $region14: #{encoder_noise_forward.1} parent=1 // pred_check
      _
    $region15: #{encoder_noise_forward.1} parent=1 // pred_check_branch
      %32 = sbr.rel (0) target = $region17
    $region16: #{encoder_noise_forward.1} parent=1 // pred_region
      %34 = vsyncadd [#allocation5], 0
      %s35 = sshll.u32 %s3, 4
      %s36 = int_to_ptr.hbm [resolvable:$true] %s35
      %s37 = sshll.u32 [#allocation4], 4
      %s38 = int_to_ptr.vmem [resolvable:$true] %s37
      %43 = dma.hbm_to_vmem [thread:$0]  %s36, 1024, %s38, [#allocation5], 64, 64, 4
    $region17: #{encoder_noise_forward.1} parent=1 // pred_fallthru
      _
    // Predicated region
    $region18: #{encoder_noise_forward.1} parent=1 // pred_check
      _
    $region19: #{encoder_noise_forward.1} parent=1 // pred_check_branch
      %45 = sbr.rel (0) target = $region21
    $region20: #{encoder_noise_forward.1} parent=1 // pred_region
      _
    $region21: #{encoder_noise_forward.1} parent=1 // pred_fallthru
      _
    // Predicated region
    $region22: #{encoder_noise_forward.1} parent=1 // pred_check
      _
    $region23: #{encoder_noise_forward.1} parent=1 // pred_check_branch
      %47 = sbr.rel (0) target = $region25
    $region24: #{encoder_noise_forward.1} parent=1 // pred_region
      %49 = vsyncadd [#allocation5], 0
      %s50 = sshll.u32 %s5, 4
      %s51 = int_to_ptr.hbm [resolvable:$true] %s50
      %s52 = sshll.u32 [#allocation6], 4
      %s53 = int_to_ptr.vmem [resolvable:$true] %s52
      %58 = dma.hbm_to_vmem [thread:$0]  %s51, 2048, %s53, [#allocation5], 128, 128, 8
    $region25: #{encoder_noise_forward.1} parent=1 // pred_fallthru
      _
    // Predicated region
    $region26: #{encoder_noise_forward.1} parent=1 // pred_check
      _
    $region27: #{encoder_noise_forward.1} parent=1 // pred_check_branch
      %60 = sbr.rel (0) target = $region29
    $region28: #{encoder_noise_forward.1} parent=1 // pred_region
      _
    $region29: #{encoder_noise_forward.1} parent=1 // pred_fallthru
      _
    // Predicated region
    $region30: #{encoder_noise_forward.1} parent=1 // pred_check
      _
    $region31: #{encoder_noise_forward.1} parent=1 // pred_check_branch
      %62 = sbr.rel (0) target = $region33
    $region32: #{encoder_noise_forward.1} parent=1 // pred_region
      %64 = dma.done [#allocation3], 1024
    $region33: #{encoder_noise_forward.1} parent=1 // pred_fallthru
      _
    // Predicated region
    $region34: #{encoder_noise_forward.1} parent=1 // pred_check
      _
    $region35: #{encoder_noise_forward.1} parent=1 // pred_check_branch
      %66 = sbr.rel (0) target = $region37
    $region36: #{encoder_noise_forward.1} parent=1 // pred_region
      %68 = dma.done [#allocation5], 1024
    $region37: #{encoder_noise_forward.1} parent=1 // pred_fallthru
      _
    // Predicated region
    $region38: #{encoder_noise_forward.1} parent=1 // pred_check
      _
    $region39: #{encoder_noise_forward.1} parent=1 // pred_check_branch
      %70 = sbr.rel (0) target = $region41
    $region40: #{encoder_noise_forward.1} parent=1 // pred_region
      %72 = dma.done [#allocation5], 2048
    $region41: #{encoder_noise_forward.1} parent=1 // pred_fallthru
      _
    %v73 = vld [vmem:[%s0] sm:$0xf]
    %v74 = vld [vmem:[#allocation2] sm:$0xf]
    %v75 = vld [vmem:[#allocation2 + $0x4] sm:$0xf]
    %v76 = vld [vmem:[#allocation2 + $0x8] sm:$0xf]
    %v77 = vld [vmem:[#allocation2 + $0xc] sm:$0xf]
    %v78 = vld [vmem:[#allocation2 + $0x10] sm:$0xf]
    %v79 = vld [vmem:[#allocation2 + $0x14] sm:$0xf]
    %v80 = vld [vmem:[#allocation2 + $0x18] sm:$0xf]
    %v81 = vld [vmem:[#allocation2 + $0x1c] sm:$0xf]
    %v82 = vld [vmem:[#allocation2 + $0x20] sm:$0xf]
    %v83 = vld [vmem:[#allocation2 + $0x24] sm:$0xf]
    %v84 = vld [vmem:[#allocation2 + $0x28] sm:$0xf]
    %v85 = vld [vmem:[#allocation2 + $0x2c] sm:$0xf]
    %v86 = vld [vmem:[#allocation2 + $0x30] sm:$0xf]
    %v87 = vld [vmem:[#allocation2 + $0x34] sm:$0xf]
    %v88 = vld [vmem:[#allocation2 + $0x38] sm:$0xf]
    %v89 = vld [vmem:[#allocation2 + $0x3c] sm:$0xf]
    %v90 = vld [vmem:[%s1] sm:$0xf]
    %v91 = vld [vmem:[#allocation4] sm:$0xf]
    %v92 = vld [vmem:[#allocation4 + $0x4] sm:$0xf]
    %v93 = vld [vmem:[#allocation4 + $0x8] sm:$0xf]
    %v94 = vld [vmem:[#allocation4 + $0xc] sm:$0xf]
    %v95 = vld [vmem:[#allocation4 + $0x10] sm:$0xf]
    %v96 = vld [vmem:[#allocation4 + $0x14] sm:$0xf]
    %v97 = vld [vmem:[#allocation4 + $0x18] sm:$0xf]
    %v98 = vld [vmem:[#allocation4 + $0x1c] sm:$0xf]
    %v99 = vld [vmem:[#allocation4 + $0x20] sm:$0xf]
    %v100 = vld [vmem:[#allocation4 + $0x24] sm:$0xf]
    %v101 = vld [vmem:[#allocation4 + $0x28] sm:$0xf]
    %v102 = vld [vmem:[#allocation4 + $0x2c] sm:$0xf]
    %v103 = vld [vmem:[#allocation4 + $0x30] sm:$0xf]
    %v104 = vld [vmem:[#allocation4 + $0x34] sm:$0xf]
    %v105 = vld [vmem:[#allocation4 + $0x38] sm:$0xf]
    %v106 = vld [vmem:[#allocation4 + $0x3c] sm:$0xf]
    %v123 = vunpack.c.l.b16 %v91
    %v124 = vunpack.c.l.b16 %v92
    %v125 = vunpack.c.l.b16 %v93
    %v126 = vunpack.c.l.b16 %v94
    %v127 = vunpack.c.l.b16 %v95
    %v128 = vunpack.c.l.b16 %v96
    %v129 = vunpack.c.l.b16 %v97
    %v130 = vunpack.c.l.b16 %v98
    %v131 = vunpack.c.l.b16 %v99
    %v132 = vunpack.c.l.b16 %v100
    %v133 = vunpack.c.l.b16 %v101
    %v134 = vunpack.c.l.b16 %v102
    %v135 = vunpack.c.l.b16 %v103
    %v136 = vunpack.c.l.b16 %v104
    %v137 = vunpack.c.l.b16 %v105
    %v138 = vunpack.c.l.b16 %v106
    %v139 = vpack.c.b16 %v124, %v123
    %v140 = vpack.c.b16 %v126, %v125
    %v141 = vpack.c.b16 %v128, %v127
    %v142 = vpack.c.b16 %v130, %v129
    %v143 = vpack.c.b16 %v132, %v131
    %v144 = vpack.c.b16 %v134, %v133
    %v145 = vpack.c.b16 %v136, %v135
    %v146 = vpack.c.b16 %v138, %v137
    %155 = vmatpush.bf16.msra.mxu0 %v146
    %156 = vmatpush.bf16.msra.mxu0 %v145
    %157 = vmatpush.bf16.msra.mxu0 %v144
    %158 = vmatpush.bf16.msra.mxu0 %v143
    %159 = vmatpush.bf16.msra.mxu0 %v142
    %160 = vmatpush.bf16.msra.mxu0 %v141
    %161 = vmatpush.bf16.msra.mxu0 %v140
    %162 = vmatpush.bf16.msra.mxu0 %v139
    %163 = vmatmul.bf16.gmra.mxu0 %v90
    %v164 = vpop.f32.mrf.mxu0
    %v165 = vadd.f32 0.0, %v164
    %v166 = vpop.f32.mrf.mxu0
    %167 = vdwg.mxu0
    %v184 = vunpack.c.l.b16 %v74
    %v185 = vunpack.c.l.b16 %v75
    %v186 = vunpack.c.l.b16 %v76
    %v187 = vunpack.c.l.b16 %v77
    %v188 = vunpack.c.l.b16 %v78
    %v189 = vunpack.c.l.b16 %v79
    %v190 = vunpack.c.l.b16 %v80
    %v191 = vunpack.c.l.b16 %v81
    %v192 = vunpack.c.l.b16 %v82
    %v193 = vunpack.c.l.b16 %v83
    %v194 = vunpack.c.l.b16 %v84
    %v195 = vunpack.c.l.b16 %v85
    %v196 = vunpack.c.l.b16 %v86
    %v197 = vunpack.c.l.b16 %v87
    %v198 = vunpack.c.l.b16 %v88
    %v199 = vunpack.c.l.b16 %v89
    %v200 = vpack.c.b16 %v185, %v184
    %v201 = vpack.c.b16 %v187, %v186
    %v202 = vpack.c.b16 %v189, %v188
    %v203 = vpack.c.b16 %v191, %v190
    %v204 = vpack.c.b16 %v193, %v192
    %v205 = vpack.c.b16 %v195, %v194
    %v206 = vpack.c.b16 %v197, %v196
    %v207 = vpack.c.b16 %v199, %v198
    %216 = vmatpush.bf16.msra.mxu0 %v207
    %217 = vmatpush.bf16.msra.mxu0 %v206
    %218 = vmatpush.bf16.msra.mxu0 %v205
    %219 = vmatpush.bf16.msra.mxu0 %v204
    %220 = vmatpush.bf16.msra.mxu0 %v203
    %221 = vmatpush.bf16.msra.mxu0 %v202
    %222 = vmatpush.bf16.msra.mxu0 %v201
    %223 = vmatpush.bf16.msra.mxu0 %v200
    %224 = vmatmul.bf16.gmra.mxu0 %v73
    %v225 = vpop.f32.mrf.mxu0
    %v226 = vadd.f32 %v165, %v225
    %v227 = vpop.f32.mrf.mxu0
    %228 = vdwg.mxu0
    %v229 = vld [vmem:[%s4] sm:$0x1]
    %v231 = vperm.slane %v229, 0
    %v233 = vadd.f32 %v226, %v231
    %v234 = vtanh.pop %v233
    %v235 = vpack.c.bf16 %v234, %v234
    %v236 = vld [vmem:[#allocation6] sm:$0xff]
    %v237 = vld [vmem:[#allocation6 + $0x8] sm:$0xff]
    %v238 = vld [vmem:[#allocation6 + $0x10] sm:$0xff]
    %v239 = vld [vmem:[#allocation6 + $0x18] sm:$0xff]
    %v240 = vld [vmem:[#allocation6 + $0x20] sm:$0xff]
    %v241 = vld [vmem:[#allocation6 + $0x28] sm:$0xff]
    %v242 = vld [vmem:[#allocation6 + $0x30] sm:$0xff]
    %v243 = vld [vmem:[#allocation6 + $0x38] sm:$0xff]
    %v244 = vld [vmem:[#allocation6 + $0x40] sm:$0xff]
    %v245 = vld [vmem:[#allocation6 + $0x48] sm:$0xff]
    %v246 = vld [vmem:[#allocation6 + $0x50] sm:$0xff]
    %v247 = vld [vmem:[#allocation6 + $0x58] sm:$0xff]
    %v248 = vld [vmem:[#allocation6 + $0x60] sm:$0xff]
    %v249 = vld [vmem:[#allocation6 + $0x68] sm:$0xff]
    %v250 = vld [vmem:[#allocation6 + $0x70] sm:$0xff]
    %v251 = vld [vmem:[#allocation6 + $0x78] sm:$0xff]
    %v252 = vld [vmem:[%s6] sm:$0x3]
    %v254 = vperm.slane %v252, 0
    %v255 = vperm.slane %v252, 1
    %v274 = vunpack.c.l.b16 %v236
    %v275 = vunpack.c.h.b16 %v236
    %v276 = vunpack.c.l.b16 %v237
    %v277 = vunpack.c.h.b16 %v237
    %v278 = vunpack.c.l.b16 %v238
    %v279 = vunpack.c.h.b16 %v238
    %v280 = vunpack.c.l.b16 %v239
    %v281 = vunpack.c.h.b16 %v239
    %v282 = vunpack.c.l.b16 %v240
    %v283 = vunpack.c.h.b16 %v240
    %v284 = vunpack.c.l.b16 %v241
    %v285 = vunpack.c.h.b16 %v241
    %v286 = vunpack.c.l.b16 %v242
    %v287 = vunpack.c.h.b16 %v242
    %v288 = vunpack.c.l.b16 %v243
    %v289 = vunpack.c.h.b16 %v243
    %v290 = vunpack.c.l.b16 %v244
    %v291 = vunpack.c.h.b16 %v244
    %v292 = vunpack.c.l.b16 %v245
    %v293 = vunpack.c.h.b16 %v245
    %v294 = vunpack.c.l.b16 %v246
    %v295 = vunpack.c.h.b16 %v246
    %v296 = vunpack.c.l.b16 %v247
    %v297 = vunpack.c.h.b16 %v247
    %v298 = vunpack.c.l.b16 %v248
    %v299 = vunpack.c.h.b16 %v248
    %v300 = vunpack.c.l.b16 %v249
    %v301 = vunpack.c.h.b16 %v249
    %v302 = vunpack.c.l.b16 %v250
    %v303 = vunpack.c.h.b16 %v250
    %v304 = vunpack.c.l.b16 %v251
    %v305 = vunpack.c.h.b16 %v251
    %v306 = vpack.c.b16 %v276, %v274
    %v307 = vpack.c.b16 %v277, %v275
    %v308 = vpack.c.b16 %v280, %v278
    %v309 = vpack.c.b16 %v281, %v279
    %v310 = vpack.c.b16 %v284, %v282
    %v311 = vpack.c.b16 %v285, %v283
    %v312 = vpack.c.b16 %v288, %v286
    %v313 = vpack.c.b16 %v289, %v287
    %v314 = vpack.c.b16 %v292, %v290
    %v315 = vpack.c.b16 %v293, %v291
    %v316 = vpack.c.b16 %v296, %v294
    %v317 = vpack.c.b16 %v297, %v295
    %v318 = vpack.c.b16 %v300, %v298
    %v319 = vpack.c.b16 %v301, %v299
    %v320 = vpack.c.b16 %v304, %v302
    %v321 = vpack.c.b16 %v305, %v303
    %338 = vmatpush.bf16.msra.mxu0 %v320
    %339 = vmatpush.bf16.msra.mxu0 %v318
    %340 = vmatpush.bf16.msra.mxu0 %v316
    %341 = vmatpush.bf16.msra.mxu0 %v314
    %342 = vmatpush.bf16.msra.mxu0 %v312
    %343 = vmatpush.bf16.msra.mxu0 %v310
    %344 = vmatpush.bf16.msra.mxu0 %v308
    %345 = vmatpush.bf16.msra.mxu0 %v306
    %346 = vmatmul.bf16.gmra.mxu0 %v235
    %v347 = vpop.f32.mrf.mxu0
    %v348 = vadd.f32 %v254, %v347
    %v349 = vpop.f32.mrf.mxu0
    %350 = vdwg.mxu0
    %351 = vmatpush.bf16.msra.mxu0 %v321
    %352 = vmatpush.bf16.msra.mxu0 %v319
    %353 = vmatpush.bf16.msra.mxu0 %v317
    %354 = vmatpush.bf16.msra.mxu0 %v315
    %355 = vmatpush.bf16.msra.mxu0 %v313
    %356 = vmatpush.bf16.msra.mxu0 %v311
    %357 = vmatpush.bf16.msra.mxu0 %v309
    %358 = vmatpush.bf16.msra.mxu0 %v307
    %359 = vmatmul.bf16.gmra.mxu0 %v235
    %v360 = vpop.f32.mrf.mxu0
    %v361 = vadd.f32 %v255, %v360
    %v362 = vpop.f32.mrf.mxu0
    %363 = vdwg.mxu0
    %v364 = vtanh.pop %v348
    %v365 = vtanh.pop %v361
    %366 = vst [vmem:[%s7] sm:$0xff] %v364
    %367 = vst [vmem:[%s7 + $0x8] sm:$0xff] %v365
    // Predicated region
    $region42: #{encoder_noise_forward.1} parent=1 // pred_check
      _
    $region43: #{encoder_noise_forward.1} parent=1 // pred_check_branch
      %369 = sbr.rel (0) target = $region45
    $region44: #{encoder_noise_forward.1} parent=1 // pred_region
      _
    $region45: #{encoder_noise_forward.1} parent=1 // pred_fallthru
      _
    // Predicated region
    $region46: #{encoder_noise_forward.1} parent=1 // pred_check
      _
    $region47: #{encoder_noise_forward.1} parent=1 // pred_check_branch
      %371 = sbr.rel (0) target = $region49
    $region48: #{encoder_noise_forward.1} parent=1 // pred_region
      _
    $region49: #{encoder_noise_forward.1} parent=1 // pred_fallthru
      _
    %372 = vsyncpa [#allocation3], 1
    %373 = vsyncpa [#allocation5], 1

// kernel: encoder_noise_forward.1
$region0: #{encoder_noise_forward.1}
  #allocation0 [shape = 'u32[]', space=smem, size = 0x4, offset = 0x4, fixed_abs, tag = 'smem constant byte address 0x4 - core index']
  #allocation1 [shape = 'u32[72,128]{1,0:T(1,128)}', space=vmem, size = 0x9000, scoped, tag = 'internal scratch']
  %s0 = inlined_call_operand.vmem [shape: bf16[8,128], index: 0, kind: input, shape index: {}]
  %s1 = inlined_call_operand.vmem [shape: bf16[8,128], index: 1, kind: input, shape index: {}]
  %s2 = inlined_call_operand.hbm [shape: bf16[128,128], index: 2, kind: input, shape index: {}]
  %s3 = inlined_call_operand.hbm [shape: bf16[128,128], index: 3, kind: input, shape index: {}]
  %s4 = inlined_call_operand.vmem [shape: f32[1,128], index: 4, kind: input, shape index: {}]
  %s5 = inlined_call_operand.hbm [shape: bf16[128,256], index: 5, kind: input, shape index: {}]
  %s6 = inlined_call_operand.vmem [shape: f32[1,256], index: 6, kind: input, shape index: {}]
  %s7 = inlined_call_operand.vmem [shape: f32[8,256], index: 7, kind: output, shape index: {}]
  %s8 = sld [smem:[#allocation0]]
  $region50: #{encoder_noise_forward.1} parent=0
    _
  %s10 = ssub.s32 1, %s8
  %s11 = scalar_select 0, %s10, %s8
  $region1: #{encoder_noise_forward.1} parent=0
    #allocation2 [shape = 'u8[32768]{0}', space=vmem, size = 0x8000, scoped, tag = 'input window, operand 2, single buffered']
    #allocation3 [shape = 's32[1]{0}', space=sflag, size = 0x4, scoped, tag = 'scoped memory for encoder_noise_forward.1']
    #allocation4 [shape = 'u8[32768]{0}', space=vmem, size = 0x8000, scoped, tag = 'input window, operand 3, single buffered']
    #allocation5 [shape = 's32[1]{0}', space=sflag, size = 0x4, scoped, tag = 'scoped memory for encoder_noise_forward.1']
    #allocation6 [shape = 'u8[65536]{0}', space=vmem, size = 0x10000, scoped, tag = 'input window, operand 5, single buffered']
    %12 = vsyncpa [#allocation3], 0
    %13 = vsyncpa [#allocation5], 0
    // Predicated region
    $region2: #{encoder_noise_forward.1} parent=1 // pred_check
      _
    $region3: #{encoder_noise_forward.1} parent=1 // pred_check_branch
      %15 = sbr.rel (0) target = $region5
    $region4: #{encoder_noise_forward.1} parent=1 // pred_region
      _
    $region5: #{encoder_noise_forward.1} parent=1 // pred_fallthru
      _
    // Predicated region
    $region6: #{encoder_noise_forward.1} parent=1 // pred_check
      _
    $region7: #{encoder_noise_forward.1} parent=1 // pred_check_branch
      %17 = sbr.rel (0) target = $region9
    $region8: #{encoder_noise_forward.1} parent=1 // pred_region
      _
    $region9: #{encoder_noise_forward.1} parent=1 // pred_fallthru
      _
    // Predicated region
    $region10: #{encoder_noise_forward.1} parent=1 // pred_check
      _
    $region11: #{encoder_noise_forward.1} parent=1 // pred_check_branch
      %19 = sbr.rel (0) target = $region13
    $region12: #{encoder_noise_forward.1} parent=1 // pred_region
      %21 = vsyncadd [#allocation3], 0
      %s22 = sshll.u32 %s2, 4
      %s23 = int_to_ptr.hbm [resolvable:$true] %s22
      %s24 = sshll.u32 [#allocation2], 4
      %s25 = int_to_ptr.vmem [resolvable:$true] %s24
      %30 = dma.hbm_to_vmem [thread:$0]  %s23, 1024, %s25, [#allocation3], 64, 64, 4
    $region13: #{encoder_noise_forward.1} parent=1 // pred_fallthru
      _
    // Predicated region
    $region14: #{encoder_noise_forward.1} parent=1 // pred_check
      _
    $region15: #{encoder_noise_forward.1} parent=1 // pred_check_branch
      %32 = sbr.rel (0) target = $region17
    $region16: #{encoder_noise_forward.1} parent=1 // pred_region
      %34 = vsyncadd [#allocation5], 0
      %s35 = sshll.u32 %s3, 4
      %s36 = int_to_ptr.hbm [resolvable:$true] %s35
      %s37 = sshll.u32 [#allocation4], 4
      %s38 = int_to_ptr.vmem [resolvable:$true] %s37
      %43 = dma.hbm_to_vmem [thread:$0]  %s36, 1024, %s38, [#allocation5], 64, 64, 4
    $region17: #{encoder_noise_forward.1} parent=1 // pred_fallthru
      _
    // Predicated region
    $region18: #{encoder_noise_forward.1} parent=1 // pred_check
      _
    $region19: #{encoder_noise_forward.1} parent=1 // pred_check_branch
      %45 = sbr.rel (0) target = $region21
    $region20: #{encoder_noise_forward.1} parent=1 // pred_region
      _
    $region21: #{encoder_noise_forward.1} parent=1 // pred_fallthru
      _
    // Predicated region
    $region22: #{encoder_noise_forward.1} parent=1 // pred_check
      _
    $region23: #{encoder_noise_forward.1} parent=1 // pred_check_branch
      %47 = sbr.rel (0) target = $region25
    $region24: #{encoder_noise_forward.1} parent=1 // pred_region
      %49 = vsyncadd [#allocation5], 0
      %s50 = sshll.u32 %s5, 4
      %s51 = int_to_ptr.hbm [resolvable:$true] %s50
      %s52 = sshll.u32 [#allocation6], 4
      %s53 = int_to_ptr.vmem [resolvable:$true] %s52
      %58 = dma.hbm_to_vmem [thread:$0]  %s51, 2048, %s53, [#allocation5], 128, 128, 8
    $region25: #{encoder_noise_forward.1} parent=1 // pred_fallthru
      _
    // Predicated region
    $region26: #{encoder_noise_forward.1} parent=1 // pred_check
      _
    $region27: #{encoder_noise_forward.1} parent=1 // pred_check_branch
      %60 = sbr.rel (0) target = $region29
    $region28: #{encoder_noise_forward.1} parent=1 // pred_region
      _
    $region29: #{encoder_noise_forward.1} parent=1 // pred_fallthru
      _
    // Predicated region
    $region30: #{encoder_noise_forward.1} parent=1 // pred_check
      _
    $region31: #{encoder_noise_forward.1} parent=1 // pred_check_branch
      %62 = sbr.rel (0) target = $region33
    $region32: #{encoder_noise_forward.1} parent=1 // pred_region
      %64 = dma.done [#allocation3], 1024
    $region33: #{encoder_noise_forward.1} parent=1 // pred_fallthru
      _
    // Predicated region
    $region34: #{encoder_noise_forward.1} parent=1 // pred_check
      _
    $region35: #{encoder_noise_forward.1} parent=1 // pred_check_branch
      %66 = sbr.rel (0) target = $region37
    $region36: #{encoder_noise_forward.1} parent=1 // pred_region
      %68 = dma.done [#allocation5], 1024
    $region37: #{encoder_noise_forward.1} parent=1 // pred_fallthru
      _
    // Predicated region
    $region38: #{encoder_noise_forward.1} parent=1 // pred_check
      _
    $region39: #{encoder_noise_forward.1} parent=1 // pred_check_branch
      %70 = sbr.rel (0) target = $region41
    $region40: #{encoder_noise_forward.1} parent=1 // pred_region
      %72 = dma.done [#allocation5], 2048
    $region41: #{encoder_noise_forward.1} parent=1 // pred_fallthru
      _
    %v73 = vld [vmem:[%s0] sm:$0xf]
    %v74 = vld [vmem:[#allocation2] sm:$0xf]
    %v75 = vld [vmem:[#allocation2 + $0x4] sm:$0xf]
    %v76 = vld [vmem:[#allocation2 + $0x8] sm:$0xf]
    %v77 = vld [vmem:[#allocation2 + $0xc] sm:$0xf]
    %v78 = vld [vmem:[#allocation2 + $0x10] sm:$0xf]
    %v79 = vld [vmem:[#allocation2 + $0x14] sm:$0xf]
    %v80 = vld [vmem:[#allocation2 + $0x18] sm:$0xf]
    %v81 = vld [vmem:[#allocation2 + $0x1c] sm:$0xf]
    %v82 = vld [vmem:[#allocation2 + $0x20] sm:$0xf]
    %v83 = vld [vmem:[#allocation2 + $0x24] sm:$0xf]
    %v84 = vld [vmem:[#allocation2 + $0x28] sm:$0xf]
    %v85 = vld [vmem:[#allocation2 + $0x2c] sm:$0xf]
    %v86 = vld [vmem:[#allocation2 + $0x30] sm:$0xf]
    %v87 = vld [vmem:[#allocation2 + $0x34] sm:$0xf]
    %v88 = vld [vmem:[#allocation2 + $0x38] sm:$0xf]
    %v89 = vld [vmem:[#allocation2 + $0x3c] sm:$0xf]
    %v90 = vld [vmem:[%s1] sm:$0xf]
    %v91 = vld [vmem:[#allocation4] sm:$0xf]
    %v92 = vld [vmem:[#allocation4 + $0x4] sm:$0xf]
    %v93 = vld [vmem:[#allocation4 + $0x8] sm:$0xf]
    %v94 = vld [vmem:[#allocation4 + $0xc] sm:$0xf]
    %v95 = vld [vmem:[#allocation4 + $0x10] sm:$0xf]
    %v96 = vld [vmem:[#allocation4 + $0x14] sm:$0xf]
    %v97 = vld [vmem:[#allocation4 + $0x18] sm:$0xf]
    %v98 = vld [vmem:[#allocation4 + $0x1c] sm:$0xf]
    %v99 = vld [vmem:[#allocation4 + $0x20] sm:$0xf]
    %v100 = vld [vmem:[#allocation4 + $0x24] sm:$0xf]
    %v101 = vld [vmem:[#allocation4 + $0x28] sm:$0xf]
    %v102 = vld [vmem:[#allocation4 + $0x2c] sm:$0xf]
    %v103 = vld [vmem:[#allocation4 + $0x30] sm:$0xf]
    %v104 = vld [vmem:[#allocation4 + $0x34] sm:$0xf]
    %v105 = vld [vmem:[#allocation4 + $0x38] sm:$0xf]
    %v106 = vld [vmem:[#allocation4 + $0x3c] sm:$0xf]
    %v123 = vunpack.c.l.b16 %v91
    %v124 = vunpack.c.l.b16 %v92
    %v125 = vunpack.c.l.b16 %v93
    %v126 = vunpack.c.l.b16 %v94
    %v127 = vunpack.c.l.b16 %v95
    %v128 = vunpack.c.l.b16 %v96
    %v129 = vunpack.c.l.b16 %v97
    %v130 = vunpack.c.l.b16 %v98
    %v131 = vunpack.c.l.b16 %v99
    %v132 = vunpack.c.l.b16 %v100
    %v133 = vunpack.c.l.b16 %v101
    %v134 = vunpack.c.l.b16 %v102
    %v135 = vunpack.c.l.b16 %v103
    %v136 = vunpack.c.l.b16 %v104
    %v137 = vunpack.c.l.b16 %v105
    %v138 = vunpack.c.l.b16 %v106
    %v139 = vpack.c.b16 %v124, %v123
    %v140 = vpack.c.b16 %v126, %v125
    %v141 = vpack.c.b16 %v128, %v127
    %v142 = vpack.c.b16 %v130, %v129
    %v143 = vpack.c.b16 %v132, %v131
    %v144 = vpack.c.b16 %v134, %v133
    %v145 = vpack.c.b16 %v136, %v135
    %v146 = vpack.c.b16 %v138, %v137
    %155 = vmatpush.bf16.msra.mxu0 %v146
    %156 = vmatpush.bf16.msra.mxu0 %v145
    %157 = vmatpush.bf16.msra.mxu0 %v144
    %158 = vmatpush.bf16.msra.mxu0 %v143
    %159 = vmatpush.bf16.msra.mxu0 %v142
    %160 = vmatpush.bf16.msra.mxu0 %v141
    %161 = vmatpush.bf16.msra.mxu0 %v140
    %162 = vmatpush.bf16.msra.mxu0 %v139
    %163 = vmatmul.bf16.gmra.mxu0 %v90
    %v164 = vpop.f32.mrf.mxu0
    %v165 = vadd.f32 0.0, %v164
    %v166 = vpop.f32.mrf.mxu0
    %167 = vdwg.mxu0
    %v184 = vunpack.c.l.b16 %v74
    %v185 = vunpack.c.l.b16 %v75
    %v186 = vunpack.c.l.b16 %v76
    %v187 = vunpack.c.l.b16 %v77
    %v188 = vunpack.c.l.b16 %v78
    %v189 = vunpack.c.l.b16 %v79
    %v190 = vunpack.c.l.b16 %v80
    %v191 = vunpack.c.l.b16 %v81
    %v192 = vunpack.c.l.b16 %v82
    %v193 = vunpack.c.l.b16 %v83
    %v194 = vunpack.c.l.b16 %v84
    %v195 = vunpack.c.l.b16 %v85
    %v196 = vunpack.c.l.b16 %v86
    %v197 = vunpack.c.l.b16 %v87
    %v198 = vunpack.c.l.b16 %v88
    %v199 = vunpack.c.l.b16 %v89
    %v200 = vpack.c.b16 %v185, %v184
    %v201 = vpack.c.b16 %v187, %v186
    %v202 = vpack.c.b16 %v189, %v188
    %v203 = vpack.c.b16 %v191, %v190
    %v204 = vpack.c.b16 %v193, %v192
    %v205 = vpack.c.b16 %v195, %v194
    %v206 = vpack.c.b16 %v197, %v196
    %v207 = vpack.c.b16 %v199, %v198
    %216 = vmatpush.bf16.msra.mxu0 %v207
    %217 = vmatpush.bf16.msra.mxu0 %v206
    %218 = vmatpush.bf16.msra.mxu0 %v205
    %219 = vmatpush.bf16.msra.mxu0 %v204
    %220 = vmatpush.bf16.msra.mxu0 %v203
    %221 = vmatpush.bf16.msra.mxu0 %v202
    %222 = vmatpush.bf16.msra.mxu0 %v201
    %223 = vmatpush.bf16.msra.mxu0 %v200
    %224 = vmatmul.bf16.gmra.mxu0 %v73
    %v225 = vpop.f32.mrf.mxu0
    %v226 = vadd.f32 %v165, %v225
    %v227 = vpop.f32.mrf.mxu0
    %228 = vdwg.mxu0
    %v229 = vld [vmem:[%s4] sm:$0x1]
    %v231 = vperm.slane %v229, 0
    %v233 = vadd.f32 %v226, %v231
    %v234 = vtanh.pop %v233
    %v235 = vpack.c.bf16 %v234, %v234
    %v236 = vld [vmem:[#allocation6] sm:$0xff]
    %v237 = vld [vmem:[#allocation6 + $0x8] sm:$0xff]
    %v238 = vld [vmem:[#allocation6 + $0x10] sm:$0xff]
    %v239 = vld [vmem:[#allocation6 + $0x18] sm:$0xff]
    %v240 = vld [vmem:[#allocation6 + $0x20] sm:$0xff]
    %v241 = vld [vmem:[#allocation6 + $0x28] sm:$0xff]
    %v242 = vld [vmem:[#allocation6 + $0x30] sm:$0xff]
    %v243 = vld [vmem:[#allocation6 + $0x38] sm:$0xff]
    %v244 = vld [vmem:[#allocation6 + $0x40] sm:$0xff]
    %v245 = vld [vmem:[#allocation6 + $0x48] sm:$0xff]
    %v246 = vld [vmem:[#allocation6 + $0x50] sm:$0xff]
    %v247 = vld [vmem:[#allocation6 + $0x58] sm:$0xff]
    %v248 = vld [vmem:[#allocation6 + $0x60] sm:$0xff]
    %v249 = vld [vmem:[#allocation6 + $0x68] sm:$0xff]
    %v250 = vld [vmem:[#allocation6 + $0x70] sm:$0xff]
    %v251 = vld [vmem:[#allocation6 + $0x78] sm:$0xff]
    %v252 = vld [vmem:[%s6] sm:$0x3]
    %v254 = vperm.slane %v252, 0
    %v255 = vperm.slane %v252, 1
    %v274 = vunpack.c.l.b16 %v236
    %v275 = vunpack.c.h.b16 %v236
    %v276 = vunpack.c.l.b16 %v237
    %v277 = vunpack.c.h.b16 %v237
    %v278 = vunpack.c.l.b16 %v238
    %v279 = vunpack.c.h.b16 %v238
    %v280 = vunpack.c.l.b16 %v239
    %v281 = vunpack.c.h.b16 %v239
    %v282 = vunpack.c.l.b16 %v240
    %v283 = vunpack.c.h.b16 %v240
    %v284 = vunpack.c.l.b16 %v241
    %v285 = vunpack.c.h.b16 %v241
    %v286 = vunpack.c.l.b16 %v242
    %v287 = vunpack.c.h.b16 %v242
    %v288 = vunpack.c.l.b16 %v243
    %v289 = vunpack.c.h.b16 %v243
    %v290 = vunpack.c.l.b16 %v244
    %v291 = vunpack.c.h.b16 %v244
    %v292 = vunpack.c.l.b16 %v245
    %v293 = vunpack.c.h.b16 %v245
    %v294 = vunpack.c.l.b16 %v246
    %v295 = vunpack.c.h.b16 %v246
    %v296 = vunpack.c.l.b16 %v247
    %v297 = vunpack.c.h.b16 %v247
    %v298 = vunpack.c.l.b16 %v248
    %v299 = vunpack.c.h.b16 %v248
    %v300 = vunpack.c.l.b16 %v249
    %v301 = vunpack.c.h.b16 %v249
    %v302 = vunpack.c.l.b16 %v250
    %v303 = vunpack.c.h.b16 %v250
    %v304 = vunpack.c.l.b16 %v251
    %v305 = vunpack.c.h.b16 %v251
    %v306 = vpack.c.b16 %v276, %v274
    %v307 = vpack.c.b16 %v277, %v275
    %v308 = vpack.c.b16 %v280, %v278
    %v309 = vpack.c.b16 %v281, %v279
    %v310 = vpack.c.b16 %v284, %v282
    %v311 = vpack.c.b16 %v285, %v283
    %v312 = vpack.c.b16 %v288, %v286
    %v313 = vpack.c.b16 %v289, %v287
    %v314 = vpack.c.b16 %v292, %v290
    %v315 = vpack.c.b16 %v293, %v291
    %v316 = vpack.c.b16 %v296, %v294
    %v317 = vpack.c.b16 %v297, %v295
    %v318 = vpack.c.b16 %v300, %v298
    %v319 = vpack.c.b16 %v301, %v299
    %v320 = vpack.c.b16 %v304, %v302
    %v321 = vpack.c.b16 %v305, %v303
    %338 = vmatpush.bf16.msra.mxu0 %v320
    %339 = vmatpush.bf16.msra.mxu0 %v318
    %340 = vmatpush.bf16.msra.mxu0 %v316
    %341 = vmatpush.bf16.msra.mxu0 %v314
    %342 = vmatpush.bf16.msra.mxu0 %v312
    %343 = vmatpush.bf16.msra.mxu0 %v310
    %344 = vmatpush.bf16.msra.mxu0 %v308
    %345 = vmatpush.bf16.msra.mxu0 %v306
    %346 = vmatmul.bf16.gmra.mxu0 %v235
    %v347 = vpop.f32.mrf.mxu0
    %v348 = vadd.f32 %v254, %v347
    %v349 = vpop.f32.mrf.mxu0
    %350 = vdwg.mxu0
    %351 = vmatpush.bf16.msra.mxu0 %v321
    %352 = vmatpush.bf16.msra.mxu0 %v319
    %353 = vmatpush.bf16.msra.mxu0 %v317
    %354 = vmatpush.bf16.msra.mxu0 %v315
    %355 = vmatpush.bf16.msra.mxu0 %v313
    %356 = vmatpush.bf16.msra.mxu0 %v311
    %357 = vmatpush.bf16.msra.mxu0 %v309
    %358 = vmatpush.bf16.msra.mxu0 %v307
    %359 = vmatmul.bf16.gmra.mxu0 %v235
    %v360 = vpop.f32.mrf.mxu0
    %v361 = vadd.f32 %v255, %v360
    %v362 = vpop.f32.mrf.mxu0
    %363 = vdwg.mxu0
    %v364 = vtanh.pop %v348
    %v365 = vtanh.pop %v361
    %366 = vst [vmem:[%s7] sm:$0xff] %v364
    %367 = vst [vmem:[%s7 + $0x8] sm:$0xff] %v365
    // Predicated region
    $region42: #{encoder_noise_forward.1} parent=1 // pred_check
      _
    $region43: #{encoder_noise_forward.1} parent=1 // pred_check_branch
      %369 = sbr.rel (0) target = $region45
    $region44: #{encoder_noise_forward.1} parent=1 // pred_region
      _
    $region45: #{encoder_noise_forward.1} parent=1 // pred_fallthru
      _
    // Predicated region
    $region46: #{encoder_noise_forward.1} parent=1 // pred_check
      _
    $region47: #{encoder_noise_forward.1} parent=1 // pred_check_branch
      %371 = sbr.rel (0) target = $region49
    $region48: #{encoder_noise_forward.1} parent=1 // pred_region
      _
    $region49: #{encoder_noise_forward.1} parent=1 // pred_fallthru
      _
    %372 = vsyncpa [#allocation3], 1
    %373 = vsyncpa [#allocation5], 1

</llo_original>
